<compile_context>
chip_gen: v6e
topology: v6e:2x2x1
jax: 0.10.0
libtpu: 0.0.40
codegen_flags: <defaults>
</compile_context>

<pallas_src>
import jax
import jax.numpy as jnp
from jax.experimental import pallas as pl
from jax.experimental.pallas import tpu as pltpu

IN_FEATURES = 10
HIDDEN = 10
OUT_FEATURES = 5
LANE = 128


def toy_mlp_kernel(xt_ref, w1_ref, b1_ref, w2_ref, b2_ref, o_ref):
    # xt_ref: (10, TB) compute dtype, batch on the lane axis.
    # w1_ref: (10, 10), w2_ref: (5, 10)  -- PyTorch (out, in) layout.
    # b1_ref: (10, 1),  b2_ref: (5, 1)   -- f32, broadcast over lanes.
    xt = xt_ref[...]                                                 # (10, TB)
    h = jnp.dot(w1_ref[...], xt, preferred_element_type=jnp.float32)  # (10, TB) f32
    h = jnp.maximum(h + b1_ref[...], 0.0)                            # ReLU on VPU
    y = jnp.dot(w2_ref[...], h.astype(w2_ref.dtype),
                preferred_element_type=jnp.float32)                  # (5, TB) f32
    o_ref[...] = (y + b2_ref[...]).astype(o_ref.dtype)               # lane-dense store


def toy_model_forward(x, w1, b1, w2, b2, *, compute_dtype=jnp.bfloat16, tb=2048):
    """x: (B, 10) f32; w1: (10, 10) (out, in); b1: (10,); w2: (5, 10); b2: (5,).

    Returns (B, 5) in x.dtype. Matches relu(x @ W1^T + b1) @ W2^T + b2 with
    activations/weights quantized to `compute_dtype` and f32 accumulation.
    """
    B = x.shape[0]
    out_dtype = x.dtype

    # Batch tile: a multiple of the 128-lane width, capped so tiny batches do
    # not over-pad and huge batches use a large pipelined tile.
    tb = min(tb, max(LANE, pl.cdiv(B, LANE) * LANE))
    b_pad = pl.cdiv(B, tb) * tb

    # Lane-dense layout: put batch on the lane axis, cast to compute dtype.
    xt = x.T.astype(compute_dtype)                         # (10, B)
    if b_pad != B:
        xt = jnp.pad(xt, ((0, 0), (0, b_pad - B)))         # (10, B_pad)

    w1c = w1.astype(compute_dtype)                         # (10, 10)
    w2c = w2.astype(compute_dtype)                         # (5, 10)
    b1c = b1.reshape(HIDDEN, 1).astype(jnp.float32)        # (10, 1)
    b2c = b2.reshape(OUT_FEATURES, 1).astype(jnp.float32)  # (5, 1)

    resident = lambda i: (0, 0)  # same block every step -> stays VMEM-resident

    out_t = pl.pallas_call(
        toy_mlp_kernel,
        out_shape=jax.ShapeDtypeStruct((OUT_FEATURES, b_pad), out_dtype),
        grid_spec=pltpu.PrefetchScalarGridSpec(
            num_scalar_prefetch=0,
            grid=(b_pad // tb,),
            in_specs=[
                pl.BlockSpec((IN_FEATURES, tb), lambda i: (0, i)),      # x tile
                pl.BlockSpec((HIDDEN, IN_FEATURES), resident),          # W1
                pl.BlockSpec((HIDDEN, 1), resident),                    # b1
                pl.BlockSpec((OUT_FEATURES, HIDDEN), resident),         # W2
                pl.BlockSpec((OUT_FEATURES, 1), resident),              # b2
            ],
            out_specs=pl.BlockSpec((OUT_FEATURES, tb), lambda i: (0, i)),
        ),
        compiler_params=pltpu.CompilerParams(
            dimension_semantics=("parallel",),   # shard batch grid over v7x's 2 TCs
        ),
    )(xt, w1c, b1c, w2c, b2c)

    return out_t[:, :B].T                                   # (B, 5)


def init_params(key):
    """Deterministic init mimicking nn.Linear's uniform(-1/sqrt(fan_in), 1/sqrt(fan_in)).

    Weights are stored in PyTorch's native (out_features, in_features) layout.
    """
    k1, k2, k3, k4 = jax.random.split(key, 4)
    bound = 1.0 / jnp.sqrt(10.0)   # fan_in is 10 for both layers
    w1 = jax.random.uniform(k1, (HIDDEN, IN_FEATURES), jnp.float32, -bound, bound)
    b1 = jax.random.uniform(k2, (HIDDEN,), jnp.float32, -bound, bound)
    w2 = jax.random.uniform(k3, (OUT_FEATURES, HIDDEN), jnp.float32, -bound, bound)
    b2 = jax.random.uniform(k4, (OUT_FEATURES,), jnp.float32, -bound, bound)
    return w1, b1, w2, b2


if __name__ == "__main__":
    key = jax.random.PRNGKey(0)
    kx, kp = jax.random.split(key)

    B = 8  # small self-test batch; the grid above scales the same code to large B
    x = jax.random.normal(kx, (B, IN_FEATURES), dtype=jnp.float32)
    w1, b1, w2, b2 = init_params(kp)

    out = toy_model_forward(x, w1, b1, w2, b2)
    out = jax.block_until_ready(out)
    assert out.shape == (B, OUT_FEATURES)

    # Pure-JAX reference with the same bf16 quantization of x / W / hidden
    # activations and f32 accumulation (so only MXU summation order differs).
    cd = jnp.bfloat16
    xq = x.astype(cd).astype(jnp.float32)
    w1q = w1.astype(cd).astype(jnp.float32)
    w2q = w2.astype(cd).astype(jnp.float32)
    h = jnp.maximum(xq @ w1q.T + b1.reshape(1, -1), 0.0)
    hq = h.astype(cd).astype(jnp.float32)
    ref = hq @ w2q.T + b2.reshape(1, -1)

    assert jnp.allclose(out, ref, atol=1e-3, rtol=1e-3), float(
        jnp.max(jnp.abs(out - ref)))

    print("KERNEL_OK")
</pallas_src>

<mosaic_0001>
module attributes {stable_mosaic.version = 11 : i64} {
  func.func @toy_mlp_kernel(%arg0: i32, %arg1: memref<10x128xbf16, #tpu.memory_space<vmem>>, %arg2: memref<10x10xbf16, #tpu.memory_space<vmem>>, %arg3: memref<10x1xf32, #tpu.memory_space<vmem>>, %arg4: memref<5x10xbf16, #tpu.memory_space<vmem>>, %arg5: memref<5x1xf32, #tpu.memory_space<vmem>>, %arg6: memref<5x128xf32, #tpu.memory_space<vmem>>) attributes {dimension_semantics = [#tpu.dimension_semantics<parallel>], iteration_bounds = array<i64: 1>, scalar_prefetch = 0 : i64, scratch_operands = 0 : i64, tpu.core_type = #tpu.core_type<tc>, window_params = [{transform_indices = @transform_0, window_bounds = array<i64: 10, 128>}, {pipeline_mode = #tpu.pipeline_mode<synchronous>, transform_indices = @transform_1, window_bounds = array<i64: 10, 10>}, {pipeline_mode = #tpu.pipeline_mode<synchronous>, transform_indices = @transform_2, window_bounds = array<i64: 10, 1>}, {pipeline_mode = #tpu.pipeline_mode<synchronous>, transform_indices = @transform_3, window_bounds = array<i64: 5, 10>}, {pipeline_mode = #tpu.pipeline_mode<synchronous>, transform_indices = @transform_4, window_bounds = array<i64: 5, 1>}, {transform_indices = @transform_5, window_bounds = array<i64: 5, 128>}]} {
    %c0 = arith.constant 0 : index
    %c0_0 = arith.constant 0 : index
    %0 = vector.load %arg1[%c0, %c0_0] : memref<10x128xbf16, #tpu.memory_space<vmem>>, vector<10x128xbf16>
    %c0_1 = arith.constant 0 : index
    %c0_2 = arith.constant 0 : index
    %1 = vector.load %arg2[%c0_1, %c0_2] : memref<10x10xbf16, #tpu.memory_space<vmem>>, vector<10x10xbf16>
    %cst = arith.constant dense<0.000000e+00> : vector<10x128xf32>
    %2 = tpu.matmul %1, %0, %cst {dimension_numbers = #tpu.dot_dimension_numbers<[1], [0], [0], [1], [0, 0, 1, 1], [], []>} : vector<10x10xbf16>, vector<10x128xbf16>, vector<10x128xf32> -> vector<10x128xf32>
    %c0_3 = arith.constant 0 : index
    %c0_4 = arith.constant 0 : index
    %3 = vector.load %arg3[%c0_3, %c0_4] : memref<10x1xf32, #tpu.memory_space<vmem>>, vector<10x1xf32>
    %4 = vector.broadcast %3 : vector<10x1xf32> to vector<10x128xf32>
    %5 = arith.addf %2, %4 : vector<10x128xf32>
    %cst_5 = arith.constant 0.000000e+00 : f32
    %6 = vector.broadcast %cst_5 : f32 to vector<10x128xf32>
    %7 = arith.maximumf %5, %6 : vector<10x128xf32>
    %c0_6 = arith.constant 0 : index
    %c0_7 = arith.constant 0 : index
    %8 = vector.load %arg4[%c0_6, %c0_7] : memref<5x10xbf16, #tpu.memory_space<vmem>>, vector<5x10xbf16>
    %9 = arith.truncf %7 : vector<10x128xf32> to vector<10x128xbf16>
    %cst_8 = arith.constant dense<0.000000e+00> : vector<5x128xf32>
    %10 = tpu.matmul %8, %9, %cst_8 {dimension_numbers = #tpu.dot_dimension_numbers<[1], [0], [0], [1], [0, 0, 1, 1], [], []>} : vector<5x10xbf16>, vector<10x128xbf16>, vector<5x128xf32> -> vector<5x128xf32>
    %c0_9 = arith.constant 0 : index
    %c0_10 = arith.constant 0 : index
    %11 = vector.load %arg5[%c0_9, %c0_10] : memref<5x1xf32, #tpu.memory_space<vmem>>, vector<5x1xf32>
    %12 = vector.broadcast %11 : vector<5x1xf32> to vector<5x128xf32>
    %13 = arith.addf %10, %12 : vector<5x128xf32>
    %c0_11 = arith.constant 0 : index
    %c0_12 = arith.constant 0 : index
    %14 = vector.load %arg6[%c0_11, %c0_12] : memref<5x128xf32, #tpu.memory_space<vmem>>, vector<5x128xf32>
    tpu.vector_store %arg6[%c0_11, %c0_12], %13 {strides = array<i32>} : memref<5x128xf32, #tpu.memory_space<vmem>>, vector<5x128xf32>,
    return
  }
  func.func @transform_0(%arg0: i32) -> (i32, i32) {
    %c0_i32 = arith.constant 0 : i32
    %c0_i32_0 = arith.constant 0 : i32
    return %c0_i32, %arg0 : i32, i32
  }
  func.func @transform_1(%arg0: i32) -> (i32, i32) {
    %c0_i32 = arith.constant 0 : i32
    %c0_i32_0 = arith.constant 0 : i32
    %c0_i32_1 = arith.constant 0 : i32
    return %c0_i32, %c0_i32_0 : i32, i32
  }
  func.func @transform_2(%arg0: i32) -> (i32, i32) {
    %c0_i32 = arith.constant 0 : i32
    %c0_i32_0 = arith.constant 0 : i32
    %c0_i32_1 = arith.constant 0 : i32
    return %c0_i32, %c0_i32_0 : i32, i32
  }
  func.func @transform_3(%arg0: i32) -> (i32, i32) {
    %c0_i32 = arith.constant 0 : i32
    %c0_i32_0 = arith.constant 0 : i32
    %c0_i32_1 = arith.constant 0 : i32
    return %c0_i32, %c0_i32_0 : i32, i32
  }
  func.func @transform_4(%arg0: i32) -> (i32, i32) {
    %c0_i32 = arith.constant 0 : i32
    %c0_i32_0 = arith.constant 0 : i32
    %c0_i32_1 = arith.constant 0 : i32
    return %c0_i32, %c0_i32_0 : i32, i32
  }
  func.func @transform_5(%arg0: i32) -> (i32, i32) {
    %c0_i32 = arith.constant 0 : i32
    %c0_i32_0 = arith.constant 0 : i32
    return %c0_i32, %arg0 : i32, i32
  }
}

</mosaic_0001>

<llo_original>
// kernel: tpu_custom_call.1
$region0: #{tpu_custom_call.1}
  #allocation0 [shape = 'u32[]', space=smem, size = 0x4, offset = 0x4, fixed_abs, tag = 'smem constant byte address 0x4 - core index']
  #allocation1 [shape = 'u32[144,128]{1,0:T(1,128)}', space=vmem, size = 0x12000, scoped, tag = 'internal scratch']
  %s0 = inlined_call_operand.vmem [shape: bf16[10,128], index: 0, kind: input, shape index: {}]
  %s1 = inlined_call_operand.vmem [shape: bf16[10,10], index: 1, kind: input, shape index: {}]
  %s2 = inlined_call_operand.vmem [shape: f32[10,1], index: 2, kind: input, shape index: {}]
  %s3 = inlined_call_operand.vmem [shape: bf16[5,10], index: 3, kind: input, shape index: {}]
  %s4 = inlined_call_operand.vmem [shape: f32[5,1], index: 4, kind: input, shape index: {}]
  %s5 = inlined_call_operand.hbm [shape: f32[5,128], index: 5, kind: output, shape index: {}]
  %s6 = sld [smem:[#allocation0]]
  $region30: #{tpu_custom_call.1} parent=0
    _
  %s8 = ssub.s32 1, %s6
  %s9 = scalar_select 0, %s8, %s6
  $region1: #{tpu_custom_call.1} parent=0
    #allocation2 [shape = 'u8[4096]{0}', space=vmem, size = 0x1000, scoped, tag = 'output window, operand 0, single buffered']
    #allocation3 [shape = 's32[1]{0}', space=sflag, size = 0x4, scoped, tag = 'scoped memory for tpu_custom_call.1']
    %10 = vsyncpa [#allocation3], 0
    // Predicated region
    $region2: #{tpu_custom_call.1} parent=1 // pred_check
      _
    $region3: #{tpu_custom_call.1} parent=1 // pred_check_branch
      %12 = sbr.rel (0) target = $region5
    $region4: #{tpu_custom_call.1} parent=1 // pred_region
      _
    $region5: #{tpu_custom_call.1} parent=1 // pred_fallthru
      _
    // Predicated region
    $region6: #{tpu_custom_call.1} parent=1 // pred_check
      _
    $region7: #{tpu_custom_call.1} parent=1 // pred_check_branch
      %14 = sbr.rel (0) target = $region9
    $region8: #{tpu_custom_call.1} parent=1 // pred_region
      _
    $region9: #{tpu_custom_call.1} parent=1 // pred_fallthru
      _
    // Predicated region
    $region10: #{tpu_custom_call.1} parent=1 // pred_check
      _
    $region11: #{tpu_custom_call.1} parent=1 // pred_check_branch
      %16 = sbr.rel (0) target = $region13
    $region12: #{tpu_custom_call.1} parent=1 // pred_region
      _
    $region13: #{tpu_custom_call.1} parent=1 // pred_fallthru
      _
    // Predicated region
    $region14: #{tpu_custom_call.1} parent=1 // pred_check
      _
    $region15: #{tpu_custom_call.1} parent=1 // pred_check_branch
      %18 = sbr.rel (0) target = $region17
    $region16: #{tpu_custom_call.1} parent=1 // pred_region
      _
    $region17: #{tpu_custom_call.1} parent=1 // pred_fallthru
      _
    // Predicated region
    $region18: #{tpu_custom_call.1} parent=1 // pred_check
      _
    $region19: #{tpu_custom_call.1} parent=1 // pred_check_branch
      %20 = sbr.rel (0) target = $region21
    $region20: #{tpu_custom_call.1} parent=1 // pred_region
      _
    $region21: #{tpu_custom_call.1} parent=1 // pred_fallthru
      _
    %v22 = vld [vmem:[%s0] sm:$0xf]
    %v23 = vld [vmem:[%s0 + $0x4] sm:$0x1]
    %v24 = vld [vmem:[%s1] sm:$0xf]
    %v25 = vld [vmem:[%s1 + $0x4] sm:$0x1]
    %v26 = vld [vmem:[%s2] sm:$0xff]
    %v27 = vld [vmem:[%s2 + $0x8] sm:$0x3]
    %29 = vset.pattern.permute.xlu0 0
    %30 = vperm.xlu0 %29, %v26
    %v31 = vpop.permute.xlu0 %30
    %34 = vset.pattern.permute.xlu0 0
    %35 = vperm.xlu0 %34, %v27
    %v36 = vpop.permute.xlu0 %35
    %v40 = vunpack.c.l.b16 %v24
    %v41 = vunpack.c.l.b16 %v25
    %v42 = vpack.c.b16 %v41, %v40
    %v45 = vunpack.c.l.b16 %v22
    %v46 = vunpack.c.l.b16 %v23
    %v47 = vpack.c.b16 %v46, %v45
    %vm48 = vcmask 80896
    %v50 = vsel %vm48, %v42, 0
    %vm52 = vcmask 1044480
    %v54 = vsel %vm52, %v47, 0
    %56 = vmatprep.subr.bf16.mxu0 0
    %57 = vmatpush1.bf16.msra.mxu0 0
    %58 = vmatprep.subr.bf16.mxu0 0
    %59 = vmatpush1.bf16.msra.mxu0 0
    %60 = vmatprep.subr.bf16.mxu0 0
    %61 = vmatpush1.bf16.msra.mxu0 0
    %62 = vmatprep.subr.bf16.mxu0 0
    %63 = vmatpush1.bf16.msra.mxu0 0
    %64 = vmatprep.subr.bf16.mxu0 0
    %65 = vmatpush1.bf16.msra.mxu0 0
    %66 = vmatprep.subr.bf16.mxu0 0
    %67 = vmatpush1.bf16.msra.mxu0 0
    %68 = vmatprep.subr.bf16.mxu0 0
    %69 = vmatpush1.bf16.msra.mxu0 0
    %70 = vmatprep.subr.bf16.mxu0 0
    %71 = vmatpush1.bf16.msra.mxu0 %v54
    %72 = vmatprep.subr.bf16.mxu0 0
    %73 = vmatpush2.bf16.msra.mxu0 0
    %74 = vmatprep.subr.bf16.mxu0 0
    %75 = vmatpush2.bf16.msra.mxu0 0
    %76 = vmatprep.subr.bf16.mxu0 0
    %77 = vmatpush2.bf16.msra.mxu0 0
    %78 = vmatprep.subr.bf16.mxu0 0
    %79 = vmatpush2.bf16.msra.mxu0 0
    %80 = vmatprep.subr.bf16.mxu0 0
    %81 = vmatpush2.bf16.msra.mxu0 0
    %82 = vmatprep.subr.bf16.mxu0 0
    %83 = vmatpush2.bf16.msra.mxu0 0
    %84 = vmatprep.subr.bf16.mxu0 0
    %85 = vmatpush2.bf16.msra.mxu0 0
    %86 = vmatprep.subr.bf16.mxu0 0
    %87 = vmatpush2.bf16.msra.mxu0 0
    %88 = vmatprep.mubr.bf16.mxu0 0
    %89 = vmatmul.mubr.bf16.gmra.mxu0 %v50
    %v90 = vpop.f32.mrf.mxu0
    %v91 = vadd.f32 %v31, %v90
    %v92 = vpop.f32.mrf.mxu0
    %v93 = vpop.f32.mrf.mxu0
    %v94 = vadd.f32 %v36, %v93
    %v95 = vpop.f32.mrf.mxu0
    %96 = vdwg.mxu0
    %v97 = vmax.f32 %v91, 0.0
    %v98 = vmax.f32 %v94, 0.0
    %v99 = vld [vmem:[%s3] sm:$0x7]
    %v100 = vpack.c.bf16 %v98, %v97
    %v101 = vld [vmem:[%s4] sm:$0x1f]
    %103 = vset.pattern.permute.xlu0 0
    %104 = vperm.xlu0 %103, %v101
    %v105 = vpop.permute.xlu0 %104
    %v108 = vsel %vm48, %v99, 0
    %v111 = vsel %vm52, %v100, 0
    %113 = vmatprep.subr.bf16.mxu0 0
    %114 = vmatpush1.bf16.msra.mxu0 0
    %115 = vmatprep.subr.bf16.mxu0 0
    %116 = vmatpush1.bf16.msra.mxu0 0
    %117 = vmatprep.subr.bf16.mxu0 0
    %118 = vmatpush1.bf16.msra.mxu0 0
    %119 = vmatprep.subr.bf16.mxu0 0
    %120 = vmatpush1.bf16.msra.mxu0 0
    %121 = vmatprep.subr.bf16.mxu0 0
    %122 = vmatpush1.bf16.msra.mxu0 0
    %123 = vmatprep.subr.bf16.mxu0 0
    %124 = vmatpush1.bf16.msra.mxu0 0
    %125 = vmatprep.subr.bf16.mxu0 0
    %126 = vmatpush1.bf16.msra.mxu0 0
    %127 = vmatprep.subr.bf16.mxu0 0
    %128 = vmatpush1.bf16.msra.mxu0 %v111
    %129 = vmatprep.subr.bf16.mxu0 0
    %130 = vmatpush2.bf16.msra.mxu0 0
    %131 = vmatprep.subr.bf16.mxu0 0
    %132 = vmatpush2.bf16.msra.mxu0 0
    %133 = vmatprep.subr.bf16.mxu0 0
    %134 = vmatpush2.bf16.msra.mxu0 0
    %135 = vmatprep.subr.bf16.mxu0 0
    %136 = vmatpush2.bf16.msra.mxu0 0
    %137 = vmatprep.subr.bf16.mxu0 0
    %138 = vmatpush2.bf16.msra.mxu0 0
    %139 = vmatprep.subr.bf16.mxu0 0
    %140 = vmatpush2.bf16.msra.mxu0 0
    %141 = vmatprep.subr.bf16.mxu0 0
    %142 = vmatpush2.bf16.msra.mxu0 0
    %143 = vmatprep.subr.bf16.mxu0 0
    %144 = vmatpush2.bf16.msra.mxu0 0
    %145 = vmatprep.mubr.bf16.mxu0 0
    %146 = vmatmul.mubr.bf16.gmra.mxu0 %v108
    %v147 = vpop.f32.mrf.mxu0
    %v148 = vadd.f32 %v105, %v147
    %v149 = vpop.f32.mrf.mxu0
    %v150 = vpop.f32.mrf.mxu0
    %v151 = vpop.f32.mrf.mxu0
    %152 = vdwg.mxu0
    %153 = vst [vmem:[#allocation2] sm:$0x1f] %v148
    // Predicated region
    $region22: #{tpu_custom_call.1} parent=1 // pred_check
      _
    $region23: #{tpu_custom_call.1} parent=1 // pred_check_branch
      %155 = sbr.rel (0) target = $region25
    $region24: #{tpu_custom_call.1} parent=1 // pred_region
      %s157 = ssub.s32 128, 128
      %158 = vsyncadd [#allocation3], %s157
      %s160 = sshll.u32 [#allocation2], 4
      %s161 = int_to_ptr.vmem [resolvable:$true] %s160
      %163 = dma.vmem_to_hbm [thread:$0]  %s161, 128, %s5, [#allocation3]
    $region25: #{tpu_custom_call.1} parent=1 // pred_fallthru
      _
    // Predicated region
    $region26: #{tpu_custom_call.1} parent=1 // pred_check
      _
    $region27: #{tpu_custom_call.1} parent=1 // pred_check_branch
      %165 = sbr.rel (0) target = $region29
    $region28: #{tpu_custom_call.1} parent=1 // pred_region
      %166 = dma.done [#allocation3], 128
    $region29: #{tpu_custom_call.1} parent=1 // pred_fallthru
      _
    %167 = vsyncpa [#allocation3], 1

</llo_original>
